<compile_context>
chip_gen: v7x
topology: tpu7x:2x2x1
jax: 0.10.0
libtpu: 0.0.40
codegen_flags: <defaults>
</compile_context>

<pallas_src>
import jax
import jax.numpy as jnp
from jax import lax
from jax.experimental import pallas as pl
from jax.experimental.pallas import tpu as pltpu

_EPI_CHUNK = 2048          # lane-strip size for the in-kernel loop
_X_TILE_BYTES = 4 << 20    # target x tile (single buffer; pipeline doubles it)


def _round_up(a, b):
    return (a + b - 1) // b * b


def _router_kernel(w_ref, x_ref, idx_ref, probs_ref, logits_ref):
    w = w_ref[...]                     # (E, D) resident router weight
    E = w.shape[0]
    tm = x_ref.shape[0]
    tc = min(tm, _EPI_CHUNK)           # python ints at trace time
    n_chunks = tm // tc

    def strip(c0):
        xc = x_ref[pl.ds(c0, tc), :]   # (tc, D) token strip
        # logits^T = W @ xc^T -> (E, tc): experts on sublanes, tokens
        # lane-dense, f32 accumulation on the MXU.  (If a bundle dump ever
        # shows the full x strip being XLU-transposed for this contraction,
        # switch to dot(xc, w.T) + a small (tc, E) result transpose.)
        lg = lax.dot_general(
            w, xc,
            dimension_numbers=(((1,), (1,)), ((), ())),
            preferred_element_type=jnp.float32,
        )                                                    # (E, tc) f32
        logits_ref[:, pl.ds(c0, tc)] = lg.astype(logits_ref.dtype)

        # Row max over experts (sublane reduce) and softmax denominator.
        m = jnp.max(lg, axis=0, keepdims=True)               # (1, tc)
        denom = jnp.sum(jnp.exp(lg - m), axis=0, keepdims=True)
        # max(softmax) = exp(m - m) / denom = 1 / denom.  Exact divide: the
        # EUP approx reciprocal (~1e-3 rel err) is not worth the precision.
        probs_ref[:, pl.ds(c0, tc)] = (1.0 / denom).astype(probs_ref.dtype)

        # argmax -> expert index, first-max tie-break (torch.argmax semantics).
        eidx = lax.broadcasted_iota(jnp.int32, lg.shape, 0)  # (E, tc)
        first_max = jnp.min(jnp.where(lg == m, eidx, E), axis=0, keepdims=True)
        idx_ref[:, pl.ds(c0, tc)] = first_max.astype(idx_ref.dtype)

    if n_chunks == 1:
        strip(0)
    else:
        def body(i, carry):
            strip(pl.multiple_of(i * tc, tc))
            return carry
        lax.fori_loop(0, n_chunks, body, None, unroll=True)


def _choose_tile(T, D, x_itemsize, tm):
    if tm is None:
        # Token tile from a VMEM byte budget (~4 MiB x tile; the BlockSpec
        # pipeline double-buffers it).  d_model=128 f32 -> TM=8192 (v5e/v6e
        # sweet spot); on v7x pass tm=16384 explicitly if desired.
        tm = max(128, (_X_TILE_BYTES // max(1, D * x_itemsize)) // 128 * 128)
    tm = _round_up(max(128, min(tm, _round_up(T, 128))), 128)
    # Megacore (v7x has 2 TensorCores): prefer >= 2 grid tiles when there is
    # enough work so the "parallel" token axis can actually split.
    if T >= 1024 and pl.cdiv(T, tm) < 2:
        tm = _round_up(pl.cdiv(T, 2), 128)
    # Keep the tile an integer number of epilogue strips.
    if tm > _EPI_CHUNK:
        tm = _round_up(tm, _EPI_CHUNK)
    return tm


def router_standard_forward(x, weight, *, tm=None, expert_major=False):
    """Pallas implementation of Router.standard_forward.

    x: (T, D) tokens; weight: (E, D) as in nn.Linear(d_model, num_experts,
    bias=False).

    Default (torch convention): (one_hot (T, E) int32, probs (T, 1) f32,
    logits (T, E) x.dtype).
    expert_major=True: (expert_idx (T,) int32, probs (T,) f32,
    logits (E, T) x.dtype) with zero layout shuffles (natural MoE-dispatch feed).
    """
    T, D = x.shape
    E, Dw = weight.shape
    assert D == Dw, "weight must be (num_experts, d_model)"

    tm = _choose_tile(T, D, x.dtype.itemsize, tm)
    grid = (pl.cdiv(T, tm),)   # no jnp.pad: partial edge block is masked

    out_shapes = (
        jax.ShapeDtypeStruct((1, T), jnp.int32),    # argmax expert index
        jax.ShapeDtypeStruct((1, T), jnp.float32),  # max softmax prob
        jax.ShapeDtypeStruct((E, T), x.dtype),      # logits^T (lane-dense)
    )

    cost = pl.CostEstimate(
        flops=2 * T * D * E,
        transcendentals=T * E,
        bytes_accessed=(
            T * D * x.dtype.itemsize            # x read (dominant)
            + E * D * weight.dtype.itemsize     # resident weight
            + T * 4 + T * 4                     # index + prob writeback
            + T * E * x.dtype.itemsize          # logits writeback
        ),
    )

    # x double-buffer + resident weight + double-buffered outputs (+ headroom).
    vmem_needed = (
        2 * tm * D * x.dtype.itemsize
        + 2 * E * D * weight.dtype.itemsize
        + 2 * (E * tm * x.dtype.itemsize + tm * 4 + tm * 4)
    )
    vmem_limit = int(min(64 << 20, max(32 << 20, vmem_needed + (8 << 20))))

    idx_t, probs_t, logits_t = pl.pallas_call(
        _router_kernel,
        out_shape=out_shapes,
        grid_spec=pltpu.PrefetchScalarGridSpec(
            num_scalar_prefetch=0,
            grid=grid,
            in_specs=[
                pl.BlockSpec((E, D), lambda i: (0, 0)),    # weight: resident
                pl.BlockSpec((tm, D), lambda i: (i, 0)),   # x: streamed tiles
            ],
            out_specs=(
                pl.BlockSpec((1, tm), lambda i: (0, i)),
                pl.BlockSpec((1, tm), lambda i: (0, i)),
                pl.BlockSpec((E, tm), lambda i: (0, i)),
            ),
        ),
        compiler_params=pltpu.CompilerParams(
            dimension_semantics=("parallel",),
            vmem_limit_bytes=vmem_limit),
        cost_estimate=cost,
    )(weight, x)

    if expert_major:
        return idx_t[0], probs_t[0], logits_t

    # torch convention: rebuild one-hot from the index with a broadcast compare
    # (cheaper than transposing an (E, T) one-hot); probs is a free reshape;
    # only logits need one (E, T) -> (T, E) transpose.
    one_hot = (idx_t[0][:, None]
               == jnp.arange(E, dtype=jnp.int32)[None, :]).astype(jnp.int32)
    probs = probs_t.reshape(T, 1)
    logits = logits_t.T
    return one_hot, probs, logits


def _reference(x, weight):
    logits = x @ weight.T
    probs = jax.nn.softmax(logits, axis=-1)
    idx = jnp.argmax(probs, axis=-1)
    onehot = jax.nn.one_hot(idx, weight.shape[0], dtype=jnp.int32)
    maxp = jnp.max(probs, axis=-1, keepdims=True)
    return onehot, maxp, logits


def _check(x, weight, **kw):
    onehot, probs, logits = router_standard_forward(x, weight, **kw)
    jax.block_until_ready((onehot, probs, logits))
    ref_onehot, ref_probs, ref_logits = _reference(x, weight)
    T, _ = x.shape
    E = weight.shape[0]
    assert onehot.shape == (T, E) and probs.shape == (T, 1) and logits.shape == (T, E)
    assert jnp.array_equal(onehot, ref_onehot)
    assert jnp.allclose(probs, ref_probs, atol=1e-4, rtol=1e-4)
    assert jnp.allclose(logits, ref_logits, atol=1e-4, rtol=1e-4)


if __name__ == "__main__":
    # Small config consistent with the module: d_model=128, num_experts=8.
    D, E = 128, 8

    key = jax.random.PRNGKey(0)
    kx, kw, kx2 = jax.random.split(key, 3)
    weight = jax.random.normal(kw, (E, D), dtype=jnp.float32) * 0.05

    # Multi-tile grid with a partial (masked) edge block: T=200, tm=128.
    x = jax.random.normal(kx, (200, D), dtype=jnp.float32)
    _check(x, weight, tm=128)
    # Default tile heuristic (single 256-wide tile, partial edge, no pad).
    _check(x, weight)
    # Larger T: exercises the in-kernel 2048-lane strips and a 2-tile grid.
    x2 = jax.random.normal(kx2, (4352, D), dtype=jnp.float32)
    _check(x2, weight)
    # Fused expert-major path (no layout shuffles) — shape smoke test.
    idx, p, lg_t = router_standard_forward(x, weight, expert_major=True)
    jax.block_until_ready((idx, p, lg_t))
    assert idx.shape == (200,) and p.shape == (200,) and lg_t.shape == (E, 200)

    print("KERNEL_OK")
</pallas_src>

<mosaic_0001>
module attributes {stable_mosaic.version = 11 : i64} {
  func.func @_router_kernel(%arg0: i32, %arg1: memref<8x128xf32, #tpu.memory_space<vmem>>, %arg2: memref<128x128xf32, #tpu.memory_space<vmem>>, %arg3: memref<1x128xi32, #tpu.memory_space<vmem>>, %arg4: memref<1x128xf32, #tpu.memory_space<vmem>>, %arg5: memref<8x128xf32, #tpu.memory_space<vmem>>) attributes {dimension_semantics = [#tpu.dimension_semantics<parallel>], iteration_bounds = array<i64: 2>, scalar_prefetch = 0 : i64, scratch_operands = 0 : i64, tpu.core_type = #tpu.core_type<tc>, window_params = [{pipeline_mode = #tpu.pipeline_mode<synchronous>, transform_indices = @transform_0, window_bounds = array<i64: 8, 128>}, {transform_indices = @transform_1, window_bounds = array<i64: 128, 128>}, {transform_indices = @transform_2, window_bounds = array<i64: 1, 128>}, {transform_indices = @transform_3, window_bounds = array<i64: 1, 128>}, {transform_indices = @transform_4, window_bounds = array<i64: 8, 128>}]} {
    %c0 = arith.constant 0 : index
    %c0_0 = arith.constant 0 : index
    %0 = vector.load %arg1[%c0, %c0_0] : memref<8x128xf32, #tpu.memory_space<vmem>>, vector<8x128xf32>
    %c0_1 = arith.constant 0 : index
    %c0_2 = arith.constant 0 : index
    %1 = vector.load %arg2[%c0_1, %c0_2] : memref<128x128xf32, #tpu.memory_space<vmem>>, vector<128x128xf32>
    %cst = arith.constant dense<0.000000e+00> : vector<8x128xf32>
    %2 = tpu.matmul %0, %1, %cst {dimension_numbers = #tpu.dot_dimension_numbers<[1], [1], [0], [0], [0, 0, 1, 0], [], []>} : vector<8x128xf32>, vector<128x128xf32>, vector<8x128xf32> -> vector<8x128xf32>
    %c0_3 = arith.constant 0 : index
    %c0_4 = arith.constant 0 : index
    %3 = vector.load %arg5[%c0_3, %c0_4] : memref<8x128xf32, #tpu.memory_space<vmem>>, vector<8x128xf32>
    tpu.vector_store %arg5[%c0_3, %c0_4], %2 {strides = array<i32>} : memref<8x128xf32, #tpu.memory_space<vmem>>, vector<8x128xf32>,
    %cst_5 = arith.constant dense<0xFF800000> : vector<128xf32>
    %4 = vector.multi_reduction <maximumf>, %2, %cst_5 [0] : vector<8x128xf32> to vector<128xf32>
    %5 = vector.shape_cast %4 : vector<128xf32> to vector<1x128xf32>
    %6 = vector.broadcast %5 : vector<1x128xf32> to vector<8x128xf32>
    %7 = arith.subf %2, %6 : vector<8x128xf32>
    %8 = math.exp %7 : vector<8x128xf32>
    %cst_6 = arith.constant dense<0.000000e+00> : vector<128xf32>
    %9 = vector.multi_reduction <add>, %8, %cst_6 [0] : vector<8x128xf32> to vector<128xf32>
    %10 = vector.shape_cast %9 : vector<128xf32> to vector<1x128xf32>
    %cst_7 = arith.constant 1.000000e+00 : f32
    %11 = vector.broadcast %cst_7 : f32 to vector<1x128xf32>
    %12 = arith.divf %11, %10 : vector<1x128xf32>
    %c0_8 = arith.constant 0 : index
    %c0_9 = arith.constant 0 : index
    %13 = vector.load %arg4[%c0_8, %c0_9] : memref<1x128xf32, #tpu.memory_space<vmem>>, vector<1x128xf32>
    tpu.vector_store %arg4[%c0_8, %c0_9], %12 {strides = array<i32>} : memref<1x128xf32, #tpu.memory_space<vmem>>, vector<1x128xf32>,
    %14 = tpu.iota {dimensions = array<i32: 0>} : vector<8x128xi32>
    %15 = vector.broadcast %5 : vector<1x128xf32> to vector<8x128xf32>
    %16 = arith.cmpf oeq, %2, %15 : vector<8x128xf32>
    %c8_i32 = arith.constant 8 : i32
    %17 = vector.broadcast %c8_i32 : i32 to vector<8x128xi32>
    %18 = arith.select %16, %14, %17 : vector<8x128xi1>, vector<8x128xi32>
    %cst_10 = arith.constant dense<2147483647> : vector<128xi32>
    %19 = vector.multi_reduction <minsi>, %18, %cst_10 [0] : vector<8x128xi32> to vector<128xi32>
    %20 = vector.shape_cast %19 : vector<128xi32> to vector<1x128xi32>
    %c0_11 = arith.constant 0 : index
    %c0_12 = arith.constant 0 : index
    %21 = vector.load %arg3[%c0_11, %c0_12] : memref<1x128xi32, #tpu.memory_space<vmem>>, vector<1x128xi32>
    tpu.vector_store %arg3[%c0_11, %c0_12], %20 {strides = array<i32>} : memref<1x128xi32, #tpu.memory_space<vmem>>, vector<1x128xi32>,
    return
  }
  func.func @transform_0(%arg0: i32) -> (i32, i32) {
    %c0_i32 = arith.constant 0 : i32
    %c0_i32_0 = arith.constant 0 : i32
    %c0_i32_1 = arith.constant 0 : i32
    return %c0_i32, %c0_i32_0 : i32, i32
  }
  func.func @transform_1(%arg0: i32) -> (i32, i32) {
    %c0_i32 = arith.constant 0 : i32
    %c0_i32_0 = arith.constant 0 : i32
    return %arg0, %c0_i32 : i32, i32
  }
  func.func @transform_2(%arg0: i32) -> (i32, i32) {
    %c0_i32 = arith.constant 0 : i32
    %c0_i32_0 = arith.constant 0 : i32
    return %c0_i32, %arg0 : i32, i32
  }
  func.func @transform_3(%arg0: i32) -> (i32, i32) {
    %c0_i32 = arith.constant 0 : i32
    %c0_i32_0 = arith.constant 0 : i32
    return %c0_i32, %arg0 : i32, i32
  }
  func.func @transform_4(%arg0: i32) -> (i32, i32) {
    %c0_i32 = arith.constant 0 : i32
    %c0_i32_0 = arith.constant 0 : i32
    return %c0_i32, %arg0 : i32, i32
  }
}

</mosaic_0001>

<llo_original>
// kernel: tpu_custom_call.1
$region0: #{tpu_custom_call.1}
  #allocation0 [shape = 'u32[]', space=smem, size = 0x4, offset = 0x4, fixed_abs, tag = 'smem constant byte address 0x4 - core index']
  #allocation1 [shape = 'u32[144,128]{1,0:T(1,128)}', space=vmem, size = 0x12000, scoped, tag = 'internal scratch']
  %s0 = inlined_call_operand.hbm [shape: f32[8,128], index: 0, kind: input, shape index: {}]
  %s1 = inlined_call_operand.hbm [shape: f32[200,128], index: 1, kind: input, shape index: {}]
  %s2 = inlined_call_operand.hbm [shape: s32[1,200], index: 2, kind: output, shape index: {0}]
  %s3 = inlined_call_operand.hbm [shape: f32[1,200], index: 3, kind: output, shape index: {1}]
  %s4 = inlined_call_operand.hbm [shape: f32[8,200], index: 4, kind: output, shape index: {2}]
  %5 = xla_tuple %s2, %s3, %s4
  %s6 = sld [smem:[#allocation0]]
  $region65: #{tpu_custom_call.1} parent=0
    _
  %s8 = ssub.s32 1, %s6
  %s9 = scalar_select 0, %s8, %s6
  $region1: #{tpu_custom_call.1} parent=0
    #allocation2 [shape = 'u8[4096]{0}', space=vmem, size = 0x1000, scoped, tag = 'input window, operand 0, single buffered']
    #allocation3 [shape = 's32[2]{0}', space=sflag, size = 0x8, scoped, tag = 'scoped memory for tpu_custom_call.1']
    #allocation4 [shape = 's32[2]{0}', space=sflag, size = 0x8, scoped, tag = 'scoped memory for tpu_custom_call.1']
    #allocation5 [shape = 'u8[131072]{0}', space=vmem, size = 0x20000, scoped, tag = 'input window, operand 1']
    #allocation6 [shape = 's32[2]{0}', space=sflag, size = 0x8, scoped, tag = 'scoped memory for tpu_custom_call.1']
    #allocation7 [shape = 'u8[1024]{0}', space=vmem, size = 0x400, scoped, tag = 'output window, operand 0']
    #allocation8 [shape = 'u8[1024]{0}', space=vmem, size = 0x400, scoped, tag = 'output window, operand 1']
    #allocation9 [shape = 's32[2]{0}', space=sflag, size = 0x8, scoped, tag = 'scoped memory for tpu_custom_call.1']
    #allocation10 [shape = 'u8[8192]{0}', space=vmem, size = 0x2000, scoped, tag = 'output window, operand 2']
    %10 = vsyncpa [#allocation3], 0
    %11 = vsyncpa [#allocation6], 0
    %s12 = scalar_lea.sflag [#allocation6], 1
    %13 = vsyncpa %s12, 0
    %14 = vsyncpa [#allocation4], 0
    %s15 = scalar_lea.sflag [#allocation4], 1
    %16 = vsyncpa %s15, 0
    %17 = vsyncpa [#allocation9], 0
    %s18 = scalar_lea.sflag [#allocation9], 1
    %19 = vsyncpa %s18, 0
    loop: start=0, step=1, limit=4
    $region2: #{tpu_custom_call.1} parent=1 // loop_pre_header
      _
    $region3: #{tpu_custom_call.1} parent=1 // loop_header
      %s21 = sphi 0, %s25
      %p22 = scmp.ge.s32.totalorder %s21, 4
      %s29 = sphi 0, %s29
      %s31 = sphi 0, %s29
      %s32 = sphi 0, %s31
      %s46 = sphi 0, %s32
      %s52 = sphi 0, %s54
      %s55 = sphi 0, %s52
      %s56 = sphi 0, %s55
      %s72 = sphi 0, %s56
      %s78 = sphi 0, %s80
      %s81 = sphi 0, %s78
      %s82 = sphi 0, %s81
      %s98 = sphi 0, %s82
      %s104 = sphi 0, %s106
      %s107 = sphi 0, %s104
      %s108 = sphi 0, %s107
      %s124 = sphi 0, %s108
      %s130 = sphi 0, %s132
      %s133 = sphi 0, %s130
      %s134 = sphi 0, %s133
      %s150 = sphi 0, %s134
    $region4: #{tpu_custom_call.1} parent=1 // loop_header_branch
      %24 = sbr.rel (%p22) target = $region8
    $region5: #{tpu_custom_call.1} parent=1 // loop_body
      %s26 = ssub.s32 %s21, 1
      %s27 = ssub.s32 %s21, 2
      %s28 = sadd.s32 %s21, 1
      %s30 = sadd.s32 %s29, 1
      %p33 = scmp.eq.s32.totalorder %s21, 1
      %p34 = scmp.ne.s32.totalorder %s29, %s31
      %p35 = scmp.eq.s32.totalorder %s21, 0
      %p36 = por %p34, %p35
      %p37 = scmp.ne.s32.totalorder %s29, %s31
      %p38 = scmp.eq.s32.totalorder %s26, 1
      %p39 = por %p37, %p38
      %p40 = scmp.ne.s32.totalorder %s31, %s32
      %p41 = scmp.eq.s32.totalorder %s26, 0
      %p42 = por %p40, %p41
      %p43 = scmp.ne.s32.totalorder %s31, %s32
      %p44 = scmp.eq.s32.totalorder %s27, 1
      %p45 = por %p43, %p44
      %p47 = scmp.ne.s32.totalorder %s32, %s46
      %p48 = scmp.eq.s32.totalorder %s27, 0
      %p49 = por %p47, %p48
      %s50 = ssub.s32 %s21, %s28
      %p51 = scmp.eq.s32.totalorder %s50, 0
      %s53 = sadd.s32 %s52, 1
      %s54 = scalar_select %p51, %s52, %s53
      %p57 = pneg %p51
      %p58 = scmp.eq.s32.totalorder %s21, 1
      %p59 = por %p57, %p58
      %p60 = scmp.ne.s32.totalorder %s52, %s55
      %p61 = scmp.eq.s32.totalorder %s21, 0
      %p62 = por %p60, %p61
      %p63 = scmp.ne.s32.totalorder %s52, %s55
      %p64 = scmp.eq.s32.totalorder %s26, 1
      %p65 = por %p63, %p64
      %p66 = scmp.ne.s32.totalorder %s55, %s56
      %p67 = scmp.eq.s32.totalorder %s26, 0
      %p68 = por %p66, %p67
      %p69 = scmp.ne.s32.totalorder %s55, %s56
      %p70 = scmp.eq.s32.totalorder %s27, 1
      %p71 = por %p69, %p70
      %p73 = scmp.ne.s32.totalorder %s56, %s72
      %p74 = scmp.eq.s32.totalorder %s27, 0
      %p75 = por %p73, %p74
      %s76 = ssub.s32 %s21, %s28
      %p77 = scmp.eq.s32.totalorder %s76, 0
      %s79 = sadd.s32 %s78, 1
      %s80 = scalar_select %p77, %s78, %s79
      %p83 = pneg %p77
      %p84 = scmp.eq.s32.totalorder %s21, 1
      %p85 = por %p83, %p84
      %p86 = scmp.ne.s32.totalorder %s78, %s81
      %p87 = scmp.eq.s32.totalorder %s21, 0
      %p88 = por %p86, %p87
      %p89 = scmp.ne.s32.totalorder %s78, %s81
      %p90 = scmp.eq.s32.totalorder %s26, 1
      %p91 = por %p89, %p90
      %p92 = scmp.ne.s32.totalorder %s81, %s82
      %p93 = scmp.eq.s32.totalorder %s26, 0
      %p94 = por %p92, %p93
      %p95 = scmp.ne.s32.totalorder %s81, %s82
      %p96 = scmp.eq.s32.totalorder %s27, 1
      %p97 = por %p95, %p96
      %p99 = scmp.ne.s32.totalorder %s82, %s98
      %p100 = scmp.eq.s32.totalorder %s27, 0
      %p101 = por %p99, %p100
      %s102 = ssub.s32 %s21, %s28
      %p103 = scmp.eq.s32.totalorder %s102, 0
      %s105 = sadd.s32 %s104, 1
      %s106 = scalar_select %p103, %s104, %s105
      %p109 = pneg %p103
      %p110 = scmp.eq.s32.totalorder %s21, 1
      %p111 = por %p109, %p110
      %p112 = scmp.ne.s32.totalorder %s104, %s107
      %p113 = scmp.eq.s32.totalorder %s21, 0
      %p114 = por %p112, %p113
      %p115 = scmp.ne.s32.totalorder %s104, %s107
      %p116 = scmp.eq.s32.totalorder %s26, 1
      %p117 = por %p115, %p116
      %p118 = scmp.ne.s32.totalorder %s107, %s108
      %p119 = scmp.eq.s32.totalorder %s26, 0
      %p120 = por %p118, %p119
      %p121 = scmp.ne.s32.totalorder %s107, %s108
      %p122 = scmp.eq.s32.totalorder %s27, 1
      %p123 = por %p121, %p122
      %p125 = scmp.ne.s32.totalorder %s108, %s124
      %p126 = scmp.eq.s32.totalorder %s27, 0
      %p127 = por %p125, %p126
      %s128 = ssub.s32 %s21, %s28
      %p129 = scmp.eq.s32.totalorder %s128, 0
      %s131 = sadd.s32 %s130, 1
      %s132 = scalar_select %p129, %s130, %s131
      %p135 = pneg %p129
      %p136 = scmp.eq.s32.totalorder %s21, 1
      %p137 = por %p135, %p136
      %p138 = scmp.ne.s32.totalorder %s130, %s133
      %p139 = scmp.eq.s32.totalorder %s21, 0
      %p140 = por %p138, %p139
      %p141 = scmp.ne.s32.totalorder %s130, %s133
      %p142 = scmp.eq.s32.totalorder %s26, 1
      %p143 = por %p141, %p142
      %p144 = scmp.ne.s32.totalorder %s133, %s134
      %p145 = scmp.eq.s32.totalorder %s26, 0
      %p146 = por %p144, %p145
      %p147 = scmp.ne.s32.totalorder %s133, %s134
      %p148 = scmp.eq.s32.totalorder %s27, 1
      %p149 = por %p147, %p148
      %p151 = scmp.ne.s32.totalorder %s134, %s150
      %p152 = scmp.eq.s32.totalorder %s27, 0
      %p153 = por %p151, %p152
      %p154 = scmp.le.s32.totalorder 1, %s21
      %p155 = scmp.lt.s32.totalorder %s21, 3
      %p156 = pnand %p154, %p155
      %p157 = pneg %p156
      // Predicated region
      $region9: #{tpu_custom_call.1} parent=5 // pred_check
        _
      $region10: #{tpu_custom_call.1} parent=5 // pred_check_branch
        %159 = sbr.rel (%p156) target = $region12
      $region11: #{tpu_custom_call.1} parent=5 // pred_region
        %s160 = ssub.s32 %s21, 1
        // Predicated region
        $region13: #{tpu_custom_call.1} parent=11 // pred_check
          %p161 = pneg %p42
        $region14: #{tpu_custom_call.1} parent=11 // pred_check_branch
          %163 = sbr.rel (%p161) target = $region16
        $region15: #{tpu_custom_call.1} parent=11 // pred_region
          %s165 = ssub.s32 128, 128
          %166 = vsyncadd [#allocation3], %s165
          %s168 = sshll.u32 [#allocation2], 4
          %s169 = int_to_ptr.vmem [resolvable:$true] %s168
          %171 = dma.hbm_to_vmem [thread:$0]  %s0, 128, %s169, [#allocation3]
        $region16: #{tpu_custom_call.1} parent=11 // pred_fallthru
          _
      $region12: #{tpu_custom_call.1} parent=5 // pred_fallthru
        _
      %p172 = scmp.lt.s32.totalorder %s21, 2
      // Predicated region
      $region17: #{tpu_custom_call.1} parent=5 // pred_check
        %p173 = pneg %p172
      $region18: #{tpu_custom_call.1} parent=5 // pred_check_branch
        %175 = sbr.rel (%p173) target = $region20
      $region19: #{tpu_custom_call.1} parent=5 // pred_region
        // Predicated region
        $region21: #{tpu_custom_call.1} parent=19 // pred_check
          %p176 = pneg %p62
        $region22: #{tpu_custom_call.1} parent=19 // pred_check_branch
          %178 = sbr.rel (%p176) target = $region24
        $region23: #{tpu_custom_call.1} parent=19 // pred_region
          %s179 = sand.u32 %s52, 1
          %s180 = scalar_lea.sflag [#allocation6], %s179
          %s181 = sand.u32 %s52, 1
          %s182 = smul.addr %s181, 128
          %s183 = scalar_lea.vmem [#allocation5], %s182
          %s184 = smul.u32 16, %s21
          %s185 = ssub.s32 25, %s184
          %p186 = scmp.lt.s32.totalorder %s185, 16
          %s187 = scalar_select %p186, %s185, 16
          %s188 = smul.u32 128, %s187
          %s190 = ssub.s32 2048, %s188
          %191 = vsyncadd %s180, %s190
          %p192 = scmp.ne.s32.totalorder 0, %s188
          %s193 = smul.addr %s184, 128
          %s194 = scalar_lea.hbm %s1, %s193
          %s195 = smul.u32 8, %s187
          %s196 = sshll.u32 %s183, 4
          %s197 = int_to_ptr.vmem [resolvable:$true] %s196
          %s198 = sshll.u32 %s195, 4
          %202 = dma.hbm_to_vmem [thread:$0]  (%p192), %s194, %s198, %s197, %s180, 128, 128, 8
        $region24: #{tpu_custom_call.1} parent=19 // pred_fallthru
          _
      $region20: #{tpu_custom_call.1} parent=5 // pred_fallthru
        _
      %p203 = scmp.le.s32.totalorder 1, %s21
      %p204 = scmp.lt.s32.totalorder %s21, 3
      %p205 = pnand %p203, %p204
      %p206 = pneg %p205
      // Predicated region
      $region25: #{tpu_custom_call.1} parent=5 // pred_check
        _
      $region26: #{tpu_custom_call.1} parent=5 // pred_check_branch
        %208 = sbr.rel (%p205) target = $region28
      $region27: #{tpu_custom_call.1} parent=5 // pred_region
        %s209 = ssub.s32 %s21, 1
        // Predicated region
        $region29: #{tpu_custom_call.1} parent=27 // pred_check
          %p210 = pneg %p42
        $region30: #{tpu_custom_call.1} parent=27 // pred_check_branch
          %212 = sbr.rel (%p210) target = $region32
        $region31: #{tpu_custom_call.1} parent=27 // pred_region
          %213 = dma.done [#allocation3], 128
        $region32: #{tpu_custom_call.1} parent=27 // pred_fallthru
          _
        %s214 = sand.u32 %s55, 1
        %s215 = scalar_lea.sflag [#allocation6], %s214
        %s216 = sand.u32 %s55, 1
        %s217 = smul.addr %s216, 128
        %s218 = scalar_lea.vmem [#allocation5], %s217
        // Predicated region
        $region33: #{tpu_custom_call.1} parent=27 // pred_check
          %p219 = pneg %p68
        $region34: #{tpu_custom_call.1} parent=27 // pred_check_branch
          %221 = sbr.rel (%p219) target = $region36
        $region35: #{tpu_custom_call.1} parent=27 // pred_region
          %222 = dma.done %s215, 2048
        $region36: #{tpu_custom_call.1} parent=27 // pred_fallthru
          _
        %p223 = pneg %p42
        %p224 = pneg %p39
        %s225 = sand.u32 %s55, 1
        %s226 = scalar_lea.sflag [#allocation6], %s225
        %s227 = sand.u32 %s55, 1
        %s228 = smul.addr %s227, 128
        %s229 = scalar_lea.vmem [#allocation5], %s228
        %p230 = pneg %p68
        %p231 = pneg %p65
        %p232 = pneg %p94
        %p233 = pneg %p91
        %s234 = sand.u32 %s81, 1
        %s235 = scalar_lea.sflag [#allocation4], %s234
        %s236 = sand.u32 %s81, 1
        %s237 = scalar_lea.vmem [#allocation7], %s236
        %p238 = pneg %p120
        %p239 = pneg %p117
        %s240 = sand.u32 %s26, 1
        %s241 = scalar_lea.sflag [#allocation9], %s240
        %s242 = sand.u32 %s107, 1
        %s243 = scalar_lea.vmem [#allocation8], %s242
        %p244 = pneg %p146
        %p245 = pneg %p143
        %s246 = sand.u32 %s26, 1
        %s247 = scalar_lea.sflag [#allocation9], %s246
        %s248 = sand.u32 %s133, 1
        %s249 = smul.addr %s248, 8
        %s250 = scalar_lea.vmem [#allocation10], %s249
        %s251 = smul.u32 16, %s26
        %s252 = ssub.s32 25, %s251
        %p253 = scmp.lt.s32.totalorder %s252, 16
        %s254 = scalar_select %p253, %s252, 16
        %s255 = smul.u32 128, %s254
        %v256 = vld [vmem:[#allocation2] sm:$0xff]
        %v257 = vld [vmem:[%s218] sm:$0xff]
        %v258 = vld [vmem:[%s218 + $0x8] sm:$0xff]
        %v259 = vld [vmem:[%s218 + $0x10] sm:$0xff]
        %v260 = vld [vmem:[%s218 + $0x18] sm:$0xff]
        %v261 = vld [vmem:[%s218 + $0x20] sm:$0xff]
        %v262 = vld [vmem:[%s218 + $0x28] sm:$0xff]
        %v263 = vld [vmem:[%s218 + $0x30] sm:$0xff]
        %v264 = vld [vmem:[%s218 + $0x38] sm:$0xff]
        %v265 = vld [vmem:[%s218 + $0x40] sm:$0xff]
        %v266 = vld [vmem:[%s218 + $0x48] sm:$0xff]
        %v267 = vld [vmem:[%s218 + $0x50] sm:$0xff]
        %v268 = vld [vmem:[%s218 + $0x58] sm:$0xff]
        %v269 = vld [vmem:[%s218 + $0x60] sm:$0xff]
        %v270 = vld [vmem:[%s218 + $0x68] sm:$0xff]
        %v271 = vld [vmem:[%s218 + $0x70] sm:$0xff]
        %v272 = vld [vmem:[%s218 + $0x78] sm:$0xff]
        %273 = vmatprep.subr.mxu0 0.0
        %274 = vmatpush1.xpose.msra.mxu0 %v257
        %275 = vmatprep.subr.mxu0 0.0
        %276 = vmatpush1.xpose.msra.mxu0 %v258
        %277 = vmatprep.subr.mxu0 0.0
        %278 = vmatpush1.xpose.msra.mxu0 %v259
        %279 = vmatprep.subr.mxu0 0.0
        %280 = vmatpush1.xpose.msra.mxu0 %v260
        %281 = vmatprep.subr.mxu0 0.0
        %282 = vmatpush1.xpose.msra.mxu0 %v261
        %283 = vmatprep.subr.mxu0 0.0
        %284 = vmatpush1.xpose.msra.mxu0 %v262
        %285 = vmatprep.subr.mxu0 0.0
        %286 = vmatpush1.xpose.msra.mxu0 %v263
        %287 = vmatprep.subr.mxu0 0.0
        %288 = vmatpush1.xpose.msra.mxu0 %v264
        %289 = vmatprep.subr.mxu0 0.0
        %290 = vmatpush1.xpose.msra.mxu0 %v265
        %291 = vmatprep.subr.mxu0 0.0
        %292 = vmatpush1.xpose.msra.mxu0 %v266
        %293 = vmatprep.subr.mxu0 0.0
        %294 = vmatpush1.xpose.msra.mxu0 %v267
        %295 = vmatprep.subr.mxu0 0.0
        %296 = vmatpush1.xpose.msra.mxu0 %v268
        %297 = vmatprep.subr.mxu0 0.0
        %298 = vmatpush1.xpose.msra.mxu0 %v269
        %299 = vmatprep.subr.mxu0 0.0
        %300 = vmatpush1.xpose.msra.mxu0 %v270
        %301 = vmatprep.subr.mxu0 0.0
        %302 = vmatpush1.xpose.msra.mxu0 %v271
        %303 = vmatprep.subr.mxu0 0.0
        %304 = vmatpush1.xpose.msra.mxu0 %v272
        %305 = vmatprep.subr.mxu0 0.0
        %306 = vmatpush1.xpose.msra.mxu0 0.0
        %307 = vmatprep.subr.mxu0 0.0
        %308 = vmatpush1.xpose.msra.mxu0 0.0
        %309 = vmatprep.subr.mxu0 0.0
        %310 = vmatpush1.xpose.msra.mxu0 0.0
        %311 = vmatprep.subr.mxu0 0.0
        %312 = vmatpush1.xpose.msra.mxu0 0.0
        %313 = vmatprep.subr.mxu0 0.0
        %314 = vmatpush1.xpose.msra.mxu0 0.0
        %315 = vmatprep.subr.mxu0 0.0
        %316 = vmatpush1.xpose.msra.mxu0 0.0
        %317 = vmatprep.subr.mxu0 0.0
        %318 = vmatpush1.xpose.msra.mxu0 0.0
        %319 = vmatprep.subr.mxu0 0.0
        %320 = vmatpush1.xpose.msra.mxu0 0.0
        %321 = vmatprep.subr.mxu0 0.0
        %322 = vmatpush1.xpose.msra.mxu0 0.0
        %323 = vmatprep.subr.mxu0 0.0
        %324 = vmatpush1.xpose.msra.mxu0 0.0
        %325 = vmatprep.subr.mxu0 0.0
        %326 = vmatpush1.xpose.msra.mxu0 0.0
        %327 = vmatprep.subr.mxu0 0.0
        %328 = vmatpush1.xpose.msra.mxu0 0.0
        %329 = vmatprep.subr.mxu0 0.0
        %330 = vmatpush1.xpose.msra.mxu0 0.0
        %331 = vmatprep.subr.mxu0 0.0
        %332 = vmatpush1.xpose.msra.mxu0 0.0
        %333 = vmatprep.subr.mxu0 0.0
        %334 = vmatpush1.xpose.msra.mxu0 0.0
        %335 = vmatprep.subr.mxu0 0.0
        %336 = vmatpush1.xpose.msra.mxu0 0.0
        %337 = vmatprep.mubr.f32.mxu0 0.0
        %338 = vmatmul.mubr.f32.gmra.mrb[0].mxu0 %v256
        %v339 = vpop.f32.mrb[0].mxu0
        %v340 = vadd.f32 0.0, %v339
        %v341 = vpop.f32.mrb[0].mxu0
        %342 = vdwg.mxu0
        %343 = vst [vmem:[%s250] sm:$0xff] %v340
        %v344 = vrot.slane %v340, 4
        %v345 = vmax.f32 %v340, %v344
        %v346 = vrot.slane %v345, 2
        %v347 = vmax.f32 %v345, %v346
        %v348 = vrot.slane %v347, 1
        %v349 = vmax.f32 %v347, %v348
        %v350 = vsub.f32 %v340, %v349
        %v351 = vmul.f32 %v350, 1.442695
        %v352 = vpow.pop %v351
        %v353 = vrot.slane %v352, 4
        %v354 = vadd.f32 %v352, %v353
        %v355 = vrot.slane %v354, 2
        %v356 = vadd.f32 %v354, %v355
        %v357 = vrot.slane %v356, 1
        %v358 = vadd.f32 %v356, %v357
        %v359 = vrcp.pop %v358
        %v360 = vmul.f32 1.0, %v359
        %361 = vst [vmem:[%s243] sm:$0x1] %v360
        %v362 = vlaneseq
        %v363 = vshrl.u32 %v362, 7
        %vm364 = vcmp.eq.f32.partialorder %v340, %v349
        %v365 = vsel %vm364, %v363, 8
        %v366 = vrot.slane %v365, 4
        %vm367 = vcmp.lt.s32.totalorder %v365, %v366
        %v368 = vsel %vm367, %v365, %v366
        %v369 = vrot.slane %v368, 2
        %vm370 = vcmp.lt.s32.totalorder %v368, %v369
        %v371 = vsel %vm370, %v368, %v369
        %v372 = vrot.slane %v371, 1
        %vm373 = vcmp.lt.s32.totalorder %v371, %v372
        %v374 = vsel %vm373, %v371, %v372
        %375 = vst [vmem:[%s237] sm:$0x1] %v374
        %s376 = sand.u32 %s81, 1
        %s377 = scalar_lea.sflag [#allocation4], %s376
        %s378 = sand.u32 %s81, 1
        %s379 = scalar_lea.vmem [#allocation7], %s378
        %s380 = sand.u32 %s26, 1
        %s381 = scalar_lea.sflag [#allocation9], %s380
        %s382 = sand.u32 %s107, 1
        %s383 = scalar_lea.vmem [#allocation8], %s382
        %s384 = sand.u32 %s26, 1
        %s385 = scalar_lea.sflag [#allocation9], %s384
        %s386 = sand.u32 %s133, 1
        %s387 = smul.addr %s386, 8
        %s388 = scalar_lea.vmem [#allocation10], %s387
        // Predicated region
        $region37: #{tpu_custom_call.1} parent=27 // pred_check
          %p389 = pneg %p91
        $region38: #{tpu_custom_call.1} parent=27 // pred_check_branch
          %391 = sbr.rel (%p389) target = $region40
        $region39: #{tpu_custom_call.1} parent=27 // pred_region
          %s393 = ssub.s32 16, 16
          %394 = vsyncadd %s377, %s393
          %s395 = smul.addr %s26, 16
          %s396 = scalar_lea.hbm %s2, %s395
          %s398 = sshll.u32 %s379, 4
          %s399 = int_to_ptr.vmem [resolvable:$true] %s398
          %401 = dma.vmem_to_hbm [thread:$0]  %s399, 16, %s396, %s377
        $region40: #{tpu_custom_call.1} parent=27 // pred_fallthru
          _
        // Predicated region
        $region41: #{tpu_custom_call.1} parent=27 // pred_check
          %p402 = pneg %p117
        $region42: #{tpu_custom_call.1} parent=27 // pred_check_branch
          %404 = sbr.rel (%p402) target = $region44
        $region43: #{tpu_custom_call.1} parent=27 // pred_region
          %s406 = ssub.s32 16, 16
          %407 = vsyncadd %s381, %s406
          %s408 = smul.addr %s26, 16
          %s409 = scalar_lea.hbm %s3, %s408
          %s411 = sshll.u32 %s383, 4
          %s412 = int_to_ptr.vmem [resolvable:$true] %s411
          %414 = dma.vmem_to_hbm [thread:$0]  %s412, 16, %s409, %s381
        $region44: #{tpu_custom_call.1} parent=27 // pred_fallthru
          _
        // Predicated region
        $region45: #{tpu_custom_call.1} parent=27 // pred_check
          %p415 = pneg %p143
        $region46: #{tpu_custom_call.1} parent=27 // pred_check_branch
          %417 = sbr.rel (%p415) target = $region48
        $region47: #{tpu_custom_call.1} parent=27 // pred_region
          %s419 = ssub.s32 128, 128
          %420 = vsyncadd %s385, %s419
          %s421 = smul.addr %s26, 128
          %s422 = scalar_lea.hbm %s4, %s421
          %s424 = sshll.u32 %s388, 4
          %s425 = int_to_ptr.vmem [resolvable:$true] %s424
          %427 = dma.vmem_to_hbm [thread:$0]  %s425, 128, %s422, %s385
        $region48: #{tpu_custom_call.1} parent=27 // pred_fallthru
          _
      $region28: #{tpu_custom_call.1} parent=5 // pred_fallthru
        _
      %p428 = scmp.le.s32.totalorder 2, %s21
      // Predicated region
      $region49: #{tpu_custom_call.1} parent=5 // pred_check
        %p429 = pneg %p428
      $region50: #{tpu_custom_call.1} parent=5 // pred_check_branch
        %431 = sbr.rel (%p429) target = $region52
      $region51: #{tpu_custom_call.1} parent=5 // pred_region
        %s432 = ssub.s32 %s21, 2
        // Predicated region
        $region53: #{tpu_custom_call.1} parent=51 // pred_check
          %p433 = pneg %p97
        $region54: #{tpu_custom_call.1} parent=51 // pred_check_branch
          %435 = sbr.rel (%p433) target = $region56
        $region55: #{tpu_custom_call.1} parent=51 // pred_region
          %s436 = sand.u32 %s82, 1
          %s437 = scalar_lea.sflag [#allocation4], %s436
          %s438 = sand.u32 %s82, 1
          %s439 = scalar_lea.vmem [#allocation7], %s438
          %440 = dma.done %s437, 16
        $region56: #{tpu_custom_call.1} parent=51 // pred_fallthru
          _
        // Predicated region
        $region57: #{tpu_custom_call.1} parent=51 // pred_check
          %p441 = pneg %p123
        $region58: #{tpu_custom_call.1} parent=51 // pred_check_branch
          %443 = sbr.rel (%p441) target = $region60
        $region59: #{tpu_custom_call.1} parent=51 // pred_region
          %s444 = sand.u32 %s27, 1
          %s445 = scalar_lea.sflag [#allocation9], %s444
          %s446 = sand.u32 %s108, 1
          %s447 = scalar_lea.vmem [#allocation8], %s446
          %448 = dma.done %s445, 16
        $region60: #{tpu_custom_call.1} parent=51 // pred_fallthru
          _
        // Predicated region
        $region61: #{tpu_custom_call.1} parent=51 // pred_check
          %p449 = pneg %p149
        $region62: #{tpu_custom_call.1} parent=51 // pred_check_branch
          %451 = sbr.rel (%p449) target = $region64
        $region63: #{tpu_custom_call.1} parent=51 // pred_region
          %s452 = sand.u32 %s27, 1
          %s453 = scalar_lea.sflag [#allocation9], %s452
          %s454 = sand.u32 %s134, 1
          %s455 = smul.addr %s454, 8
          %s456 = scalar_lea.vmem [#allocation10], %s455
          %457 = dma.done %s453, 128
        $region64: #{tpu_custom_call.1} parent=51 // pred_fallthru
          _
      $region52: #{tpu_custom_call.1} parent=5 // pred_fallthru
        _
    $region6: #{tpu_custom_call.1} parent=1 // loop_footer
      %s25 = sadd.s32 1, %s21
    $region7: #{tpu_custom_call.1} parent=1 // loop_footer_branch
      %20 = sbr.rel target = $region3
    $region8: #{tpu_custom_call.1} parent=1 // loop_exit
      _
    %458 = vsyncpa [#allocation3], 1
    %s459 = scalar_lea.sflag [#allocation3], 1
    %460 = vsyncpa %s459, 1
    %461 = vsyncpa [#allocation6], 1
    %s462 = scalar_lea.sflag [#allocation6], 1
    %463 = vsyncpa %s462, 1
    %464 = vsyncpa [#allocation4], 1
    %s465 = scalar_lea.sflag [#allocation4], 1
    %466 = vsyncpa %s465, 1
    %467 = vsyncpa [#allocation9], 1
    %s468 = scalar_lea.sflag [#allocation9], 1
    %469 = vsyncpa %s468, 1

</llo_original>
